<compile_context>
chip_gen: v7x
topology: tpu7x:2x2x1
jax: 0.10.0
libtpu: 0.0.40
codegen_flags: <defaults>
</compile_context>

<pallas_src>
import jax
import jax.numpy as jnp
from jax.experimental import pallas as pl
from jax.experimental.pallas import tpu as pltpu


def _round_up(x, m):
    return (x + m - 1) // m * m


def multimodal_kernel(x_ref, wb_ref, bb_ref, w1_ref, b1_ref, w2_ref, b2_ref,
                      out_ref):
    # Fused branch layer: relu([img|txt] @ blockdiag(Wi, Wt) + [bi|bt]).
    #   Columns [0:Hp] hold img_h, columns [Hp:2Hp] hold txt_h.
    h = jnp.dot(x_ref[...], wb_ref[...], preferred_element_type=jnp.float32)
    h = jnp.maximum(h + bb_ref[...], 0.0)

    # fusion_fc1: relu([img_h | txt_h] @ W1 + b1)  (W1 rows pre-realigned).
    h1 = jnp.dot(h.astype(w1_ref.dtype), w1_ref[...],
                 preferred_element_type=jnp.float32)
    h1 = jnp.maximum(h1 + b1_ref[...], 0.0)

    # fusion_fc2 (out_features = 1): VPU multiply + cross-lane reduce; scalar
    # bias read from SMEM.  Then sigmoid (EUP).
    logits = jnp.sum(h1 * w2_ref[...], axis=-1, keepdims=True) + b2_ref[0, 0]
    out_ref[...] = jax.nn.sigmoid(logits)


def init_params(key, image_dim, text_dim, hidden_dim):
    """Raw params, torch-Linear-equivalent layout (W stored as [in, out])."""
    ks = jax.random.split(key, 8)
    s = 0.05
    wi = s * jax.random.normal(ks[0], (image_dim, hidden_dim), jnp.float32)
    bi = s * jax.random.normal(ks[1], (hidden_dim,), jnp.float32)
    wt = s * jax.random.normal(ks[2], (text_dim, hidden_dim), jnp.float32)
    bt = s * jax.random.normal(ks[3], (hidden_dim,), jnp.float32)
    w1 = s * jax.random.normal(ks[4], (2 * hidden_dim, hidden_dim), jnp.float32)
    b1 = s * jax.random.normal(ks[5], (hidden_dim,), jnp.float32)
    w2 = s * jax.random.normal(ks[6], (hidden_dim, 1), jnp.float32)
    b2 = s * jax.random.normal(ks[7], (1,), jnp.float32)
    return (wi, bi, wt, bt, w1, b1, w2, b2)


def pack_params(raw, compute_dtype=jnp.bfloat16):
    """One-time repack: fuse branches (block-diag), pad feature dims to 128."""
    wi, bi, wt, bt, w1, b1, w2, b2 = raw
    image_dim, hidden_dim = wi.shape
    text_dim = wt.shape[0]
    dp = _round_up(image_dim + text_dim, 128)   # fused/padded input width
    hp = _round_up(hidden_dim, 128)             # padded hidden width

    # Block-diagonal branch weight (dp, 2*hp) and fused branch bias (1, 2*hp).
    wb = jnp.zeros((dp, 2 * hp), jnp.float32)
    wb = wb.at[:image_dim, :hidden_dim].set(wi)
    wb = wb.at[image_dim:image_dim + text_dim, hp:hp + hidden_dim].set(wt)
    bb = jnp.zeros((1, 2 * hp), jnp.float32)
    bb = bb.at[0, :hidden_dim].set(bi)
    bb = bb.at[0, hp:hp + hidden_dim].set(bt)

    # fusion_fc1 weight, rows realigned to the [img_h | txt_h] padded layout.
    w1p = jnp.zeros((2 * hp, hp), jnp.float32)
    w1p = w1p.at[:hidden_dim, :hidden_dim].set(w1[:hidden_dim])
    w1p = w1p.at[hp:hp + hidden_dim, :hidden_dim].set(w1[hidden_dim:])
    b1p = jnp.zeros((1, hp), jnp.float32).at[0, :hidden_dim].set(b1)

    # fusion_fc2 as a (1, hp) row (VPU reduce) + scalar bias for SMEM.
    w2p = jnp.zeros((1, hp), jnp.float32).at[0, :hidden_dim].set(w2.reshape(-1))
    b2p = jnp.asarray(b2, jnp.float32).reshape(1, 1)

    return (wb.astype(compute_dtype), bb, w1p.astype(compute_dtype), b1p,
            w2p, b2p)


def multimodal_forward(image, text, packed, *, block_b=512):
    """image: (B, image_dim), text: (B, text_dim) -> (B,) sigmoid scores."""
    wb, bb, w1, b1, w2, b2 = packed
    assert image.shape[0] == text.shape[0]
    b = image.shape[0]
    in_dim = image.shape[1] + text.shape[1]
    dp, two_hp = wb.shape
    hp = w1.shape[1]

    # Batch tile: large for streaming throughput; shrunk (16-aligned for bf16
    # sublane packing) when the whole batch fits in one tile.
    tb = block_b if b >= block_b else _round_up(b, 16)
    b_pad = _round_up(b, tb)

    # Fuse + zero-pad + cast the inputs once in the wrapper (XLA fuses this).
    x = jnp.concatenate([image, text], axis=1)
    x = jnp.pad(x, ((0, b_pad - b), (0, dp - in_dim))).astype(wb.dtype)

    out = pl.pallas_call(
        multimodal_kernel,
        out_shape=jax.ShapeDtypeStruct((b_pad, 1), jnp.float32),
        grid=(b_pad // tb,),
        in_specs=[
            pl.BlockSpec((tb, dp), lambda i: (i, 0)),           # streamed input
            pl.BlockSpec((dp, two_hp), lambda i: (0, 0)),       # resident weights
            pl.BlockSpec((1, two_hp), lambda i: (0, 0)),
            pl.BlockSpec((two_hp, hp), lambda i: (0, 0)),
            pl.BlockSpec((1, hp), lambda i: (0, 0)),
            pl.BlockSpec((1, hp), lambda i: (0, 0)),
            pl.BlockSpec(memory_space=pltpu.MemorySpace.SMEM),  # scalar bias b2
        ],
        out_specs=pl.BlockSpec((tb, 1), lambda i: (i, 0)),
        compiler_params=pltpu.CompilerParams(
            dimension_semantics=("parallel",),
        ),
    )(x, wb, bb, w1, b1, w2, b2)

    # torch: output.squeeze() -> (B,); drop batch padding.
    return out[:b, 0]


def reference_forward(image, text, raw):
    wi, bi, wt, bt, w1, b1, w2, b2 = raw
    img_h = jax.nn.relu(image @ wi + bi)
    txt_h = jax.nn.relu(text @ wt + bt)
    fusion = jnp.concatenate([img_h, txt_h], axis=1)
    h1 = jax.nn.relu(fusion @ w1 + b1)
    return jnp.squeeze(jax.nn.sigmoid(h1 @ w2 + b2), axis=-1)


if __name__ == "__main__":
    B, image_dim, text_dim, hidden_dim = 8, 64, 48, 32

    key = jax.random.PRNGKey(0)
    k_img, k_txt, k_params = jax.random.split(key, 3)

    image = jax.random.normal(k_img, (B, image_dim), jnp.float32)
    text = jax.random.normal(k_txt, (B, text_dim), jnp.float32)

    raw = init_params(k_params, image_dim, text_dim, hidden_dim)
    packed = pack_params(raw)  # bf16 matmul weights, f32 biases

    fwd = jax.jit(multimodal_forward)
    out = jax.block_until_ready(fwd(image, text, packed))

    ref = reference_forward(image, text, raw)
    assert out.shape == (B,), out.shape
    # bf16 matmul operands (f32 accumulation) vs f32 reference -> loose tol.
    assert jnp.allclose(out, ref, atol=1e-2, rtol=1e-2), float(
        jnp.max(jnp.abs(out - ref)))

    print("KERNEL_OK")
</pallas_src>

<mosaic_0001>
module attributes {stable_mosaic.version = 11 : i64} {
  func.func @multimodal_kernel(%arg0: i32, %arg1: memref<16x128xbf16, #tpu.memory_space<vmem>>, %arg2: memref<128x256xbf16, #tpu.memory_space<vmem>>, %arg3: memref<1x256xf32, #tpu.memory_space<vmem>>, %arg4: memref<256x128xbf16, #tpu.memory_space<vmem>>, %arg5: memref<1x128xf32, #tpu.memory_space<vmem>>, %arg6: memref<1x128xf32, #tpu.memory_space<vmem>>, %arg7: memref<1x1xf32, #tpu.memory_space<smem>>, %arg8: memref<16x1xf32, #tpu.memory_space<vmem>>) attributes {dimension_semantics = [#tpu.dimension_semantics<parallel>], iteration_bounds = array<i64: 1>, scalar_prefetch = 0 : i64, scratch_operands = 0 : i64, tpu.core_type = #tpu.core_type<tc>, window_params = [{transform_indices = @transform_0, window_bounds = array<i64: 16, 128>}, {pipeline_mode = #tpu.pipeline_mode<synchronous>, transform_indices = @transform_1, window_bounds = array<i64: 128, 256>}, {pipeline_mode = #tpu.pipeline_mode<synchronous>, transform_indices = @transform_2, window_bounds = array<i64: 1, 256>}, {pipeline_mode = #tpu.pipeline_mode<synchronous>, transform_indices = @transform_3, window_bounds = array<i64: 256, 128>}, {pipeline_mode = #tpu.pipeline_mode<synchronous>, transform_indices = @transform_4, window_bounds = array<i64: 1, 128>}, {pipeline_mode = #tpu.pipeline_mode<synchronous>, transform_indices = @transform_5, window_bounds = array<i64: 1, 128>}, {transform_indices = @transform_6, window_bounds = array<i64: 1, 1>}, {transform_indices = @transform_7, window_bounds = array<i64: 16, 1>}]} {
    %c0 = arith.constant 0 : index
    %c0_0 = arith.constant 0 : index
    %0 = vector.load %arg1[%c0, %c0_0] : memref<16x128xbf16, #tpu.memory_space<vmem>>, vector<16x128xbf16>
    %c0_1 = arith.constant 0 : index
    %c0_2 = arith.constant 0 : index
    %1 = vector.load %arg2[%c0_1, %c0_2] : memref<128x256xbf16, #tpu.memory_space<vmem>>, vector<128x256xbf16>
    %cst = arith.constant dense<0.000000e+00> : vector<16x256xf32>
    %2 = tpu.matmul %0, %1, %cst {dimension_numbers = #tpu.dot_dimension_numbers<[1], [0], [0], [1], [0, 0, 1, 1], [], []>} : vector<16x128xbf16>, vector<128x256xbf16>, vector<16x256xf32> -> vector<16x256xf32>
    %c0_3 = arith.constant 0 : index
    %c0_4 = arith.constant 0 : index
    %3 = vector.load %arg3[%c0_3, %c0_4] : memref<1x256xf32, #tpu.memory_space<vmem>>, vector<1x256xf32>
    %4 = vector.broadcast %3 : vector<1x256xf32> to vector<16x256xf32>
    %5 = arith.addf %2, %4 : vector<16x256xf32>
    %cst_5 = arith.constant 0.000000e+00 : f32
    %6 = vector.broadcast %cst_5 : f32 to vector<16x256xf32>
    %7 = arith.maximumf %5, %6 : vector<16x256xf32>
    %8 = arith.truncf %7 : vector<16x256xf32> to vector<16x256xbf16>
    %c0_6 = arith.constant 0 : index
    %c0_7 = arith.constant 0 : index
    %9 = vector.load %arg4[%c0_6, %c0_7] : memref<256x128xbf16, #tpu.memory_space<vmem>>, vector<256x128xbf16>
    %cst_8 = arith.constant dense<0.000000e+00> : vector<16x128xf32>
    %10 = tpu.matmul %8, %9, %cst_8 {dimension_numbers = #tpu.dot_dimension_numbers<[1], [0], [0], [1], [0, 0, 1, 1], [], []>} : vector<16x256xbf16>, vector<256x128xbf16>, vector<16x128xf32> -> vector<16x128xf32>
    %c0_9 = arith.constant 0 : index
    %c0_10 = arith.constant 0 : index
    %11 = vector.load %arg5[%c0_9, %c0_10] : memref<1x128xf32, #tpu.memory_space<vmem>>, vector<1x128xf32>
    %12 = vector.broadcast %11 : vector<1x128xf32> to vector<16x128xf32>
    %13 = arith.addf %10, %12 : vector<16x128xf32>
    %cst_11 = arith.constant 0.000000e+00 : f32
    %14 = vector.broadcast %cst_11 : f32 to vector<16x128xf32>
    %15 = arith.maximumf %13, %14 : vector<16x128xf32>
    %c0_12 = arith.constant 0 : index
    %c0_13 = arith.constant 0 : index
    %16 = vector.load %arg6[%c0_12, %c0_13] : memref<1x128xf32, #tpu.memory_space<vmem>>, vector<1x128xf32>
    %17 = vector.broadcast %16 : vector<1x128xf32> to vector<16x128xf32>
    %18 = arith.mulf %15, %17 : vector<16x128xf32>
    %cst_14 = arith.constant dense<0.000000e+00> : vector<16xf32>
    %19 = vector.multi_reduction <add>, %18, %cst_14 [1] : vector<16x128xf32> to vector<16xf32>
    %20 = vector.shape_cast %19 : vector<16xf32> to vector<16x1xf32>
    %c0_15 = arith.constant 0 : index
    %c0_16 = arith.constant 0 : index
    %21 = memref.load %arg7[%c0_15, %c0_16] : memref<1x1xf32, #tpu.memory_space<smem>>
    %22 = vector.broadcast %21 : f32 to vector<16x1xf32>
    %23 = arith.addf %20, %22 : vector<16x1xf32>
    %24 = arith.negf %23 : vector<16x1xf32>
    %25 = math.exp %24 : vector<16x1xf32>
    %cst_17 = arith.constant 1.000000e+00 : f32
    %26 = vector.broadcast %cst_17 : f32 to vector<16x1xf32>
    %27 = arith.addf %26, %25 : vector<16x1xf32>
    %28 = arith.divf %26, %27 : vector<16x1xf32>
    %c0_18 = arith.constant 0 : index
    %c0_19 = arith.constant 0 : index
    %29 = vector.load %arg8[%c0_18, %c0_19] : memref<16x1xf32, #tpu.memory_space<vmem>>, vector<16x1xf32>
    tpu.vector_store %arg8[%c0_18, %c0_19], %28 {strides = array<i32>} : memref<16x1xf32, #tpu.memory_space<vmem>>, vector<16x1xf32>,
    return
  }
  func.func @transform_0(%arg0: i32) -> (i32, i32) {
    %c0_i32 = arith.constant 0 : i32
    %c0_i32_0 = arith.constant 0 : i32
    return %arg0, %c0_i32 : i32, i32
  }
  func.func @transform_1(%arg0: i32) -> (i32, i32) {
    %c0_i32 = arith.constant 0 : i32
    %c0_i32_0 = arith.constant 0 : i32
    %c0_i32_1 = arith.constant 0 : i32
    return %c0_i32, %c0_i32_0 : i32, i32
  }
  func.func @transform_2(%arg0: i32) -> (i32, i32) {
    %c0_i32 = arith.constant 0 : i32
    %c0_i32_0 = arith.constant 0 : i32
    %c0_i32_1 = arith.constant 0 : i32
    return %c0_i32, %c0_i32_0 : i32, i32
  }
  func.func @transform_3(%arg0: i32) -> (i32, i32) {
    %c0_i32 = arith.constant 0 : i32
    %c0_i32_0 = arith.constant 0 : i32
    %c0_i32_1 = arith.constant 0 : i32
    return %c0_i32, %c0_i32_0 : i32, i32
  }
  func.func @transform_4(%arg0: i32) -> (i32, i32) {
    %c0_i32 = arith.constant 0 : i32
    %c0_i32_0 = arith.constant 0 : i32
    %c0_i32_1 = arith.constant 0 : i32
    return %c0_i32, %c0_i32_0 : i32, i32
  }
  func.func @transform_5(%arg0: i32) -> (i32, i32) {
    %c0_i32 = arith.constant 0 : i32
    %c0_i32_0 = arith.constant 0 : i32
    %c0_i32_1 = arith.constant 0 : i32
    return %c0_i32, %c0_i32_0 : i32, i32
  }
  func.func @transform_6(%arg0: i32) -> (i32, i32) {
    %c0_i32 = arith.constant 0 : i32
    %c0_i32_0 = arith.constant 0 : i32
    %c0_i32_1 = arith.constant 0 : i32
    return %c0_i32, %c0_i32_0 : i32, i32
  }
  func.func @transform_7(%arg0: i32) -> (i32, i32) {
    %c0_i32 = arith.constant 0 : i32
    %c0_i32_0 = arith.constant 0 : i32
    return %arg0, %c0_i32 : i32, i32
  }
}

</mosaic_0001>

<llo_original>
// kernel: multimodal_forward.1
$region0: #{multimodal_forward.1}
  #allocation0 [shape = 'u32[]', space=smem, size = 0x4, offset = 0x4, fixed_abs, tag = 'smem constant byte address 0x4 - core index']
  #allocation1 [shape = 'u32[144,128]{1,0:T(1,128)}', space=vmem, size = 0x12000, scoped, tag = 'internal scratch']
  #allocation2 [shape = 'f32[1,1]{1,0:T(1,128)S(6)}', space=smem, size = 0x200, scoped, tag = 'scoped memory for multimodal_forward.1']
  %s0 = inlined_call_operand.vmem [shape: bf16[16,128], index: 0, kind: input, shape index: {}]
  %s1 = inlined_call_operand.hbm [shape: bf16[128,256], index: 1, kind: input, shape index: {}]
  %s2 = inlined_call_operand.vmem [shape: f32[1,256], index: 2, kind: input, shape index: {}]
  %s3 = inlined_call_operand.hbm [shape: bf16[256,128], index: 3, kind: input, shape index: {}]
  %s4 = inlined_call_operand.vmem [shape: f32[1,128], index: 4, kind: input, shape index: {}]
  %s5 = inlined_call_operand.vmem [shape: f32[1,128], index: 5, kind: input, shape index: {}]
  %s6 = inlined_call_operand.<no memory space> [shape: f32[1,1], index: 6, kind: input, shape index: {}]
  %s7 = inlined_call_operand.vmem [shape: f32[16,1], index: 7, kind: output, shape index: {}]
  %s8 = sld [smem:[#allocation0]]
  $region46: #{multimodal_forward.1} parent=0
    _
  %s10 = ssub.s32 1, %s8
  %s11 = scalar_select 0, %s10, %s8
  %12 = sst [smem:[#allocation2]] %s6
  $region1: #{multimodal_forward.1} parent=0
    #allocation3 [shape = 'u8[65536]{0}', space=vmem, size = 0x10000, scoped, tag = 'input window, operand 1, single buffered']
    #allocation4 [shape = 's32[1]{0}', space=sflag, size = 0x4, scoped, tag = 'scoped memory for multimodal_forward.1']
    #allocation5 [shape = 'u8[65536]{0}', space=vmem, size = 0x10000, scoped, tag = 'input window, operand 3, single buffered']
    #allocation6 [shape = 's32[1]{0}', space=sflag, size = 0x4, scoped, tag = 'scoped memory for multimodal_forward.1']
    %13 = vsyncpa [#allocation4], 0
    %14 = vsyncpa [#allocation6], 0
    // Predicated region
    $region2: #{multimodal_forward.1} parent=1 // pred_check
      _
    $region3: #{multimodal_forward.1} parent=1 // pred_check_branch
      %16 = sbr.rel (0) target = $region5
    $region4: #{multimodal_forward.1} parent=1 // pred_region
      _
    $region5: #{multimodal_forward.1} parent=1 // pred_fallthru
      _
    // Predicated region
    $region6: #{multimodal_forward.1} parent=1 // pred_check
      _
    $region7: #{multimodal_forward.1} parent=1 // pred_check_branch
      %18 = sbr.rel (0) target = $region9
    $region8: #{multimodal_forward.1} parent=1 // pred_region
      %s20 = ssub.s32 2048, 2048
      %21 = vsyncadd [#allocation4], %s20
      %s22 = sshll.u32 [#allocation3], 4
      %s23 = int_to_ptr.vmem [resolvable:$true] %s22
      %28 = dma.hbm_to_vmem [thread:$0]  %s1, 2048, %s23, [#allocation4], 128, 128, 8
    $region9: #{multimodal_forward.1} parent=1 // pred_fallthru
      _
    // Predicated region
    $region10: #{multimodal_forward.1} parent=1 // pred_check
      _
    $region11: #{multimodal_forward.1} parent=1 // pred_check_branch
      %30 = sbr.rel (0) target = $region13
    $region12: #{multimodal_forward.1} parent=1 // pred_region
      _
    $region13: #{multimodal_forward.1} parent=1 // pred_fallthru
      _
    // Predicated region
    $region14: #{multimodal_forward.1} parent=1 // pred_check
      _
    $region15: #{multimodal_forward.1} parent=1 // pred_check_branch
      %32 = sbr.rel (0) target = $region17
    $region16: #{multimodal_forward.1} parent=1 // pred_region
      %s34 = ssub.s32 2048, 2048
      %35 = vsyncadd [#allocation6], %s34
      %s36 = sshll.u32 [#allocation5], 4
      %s37 = int_to_ptr.vmem [resolvable:$true] %s36
      %42 = dma.hbm_to_vmem [thread:$0]  %s3, 2048, %s37, [#allocation6], 64, 64, 4
    $region17: #{multimodal_forward.1} parent=1 // pred_fallthru
      _
    // Predicated region
    $region18: #{multimodal_forward.1} parent=1 // pred_check
      _
    $region19: #{multimodal_forward.1} parent=1 // pred_check_branch
      %44 = sbr.rel (0) target = $region21
    $region20: #{multimodal_forward.1} parent=1 // pred_region
      _
    $region21: #{multimodal_forward.1} parent=1 // pred_fallthru
      _
    // Predicated region
    $region22: #{multimodal_forward.1} parent=1 // pred_check
      _
    $region23: #{multimodal_forward.1} parent=1 // pred_check_branch
      %46 = sbr.rel (0) target = $region25
    $region24: #{multimodal_forward.1} parent=1 // pred_region
      _
    $region25: #{multimodal_forward.1} parent=1 // pred_fallthru
      _
    // Predicated region
    $region26: #{multimodal_forward.1} parent=1 // pred_check
      _
    $region27: #{multimodal_forward.1} parent=1 // pred_check_branch
      %48 = sbr.rel (0) target = $region29
    $region28: #{multimodal_forward.1} parent=1 // pred_region
      _
    $region29: #{multimodal_forward.1} parent=1 // pred_fallthru
      _
    // Predicated region
    $region30: #{multimodal_forward.1} parent=1 // pred_check
      _
    $region31: #{multimodal_forward.1} parent=1 // pred_check_branch
      %50 = sbr.rel (0) target = $region33
    $region32: #{multimodal_forward.1} parent=1 // pred_region
      %51 = dma.done [#allocation4], 2048
    $region33: #{multimodal_forward.1} parent=1 // pred_fallthru
      _
    // Predicated region
    $region34: #{multimodal_forward.1} parent=1 // pred_check
      _
    $region35: #{multimodal_forward.1} parent=1 // pred_check_branch
      %53 = sbr.rel (0) target = $region37
    $region36: #{multimodal_forward.1} parent=1 // pred_region
      %54 = dma.done [#allocation6], 2048
    $region37: #{multimodal_forward.1} parent=1 // pred_fallthru
      _
    %v56 = vld [vmem:[%s0] sm:$0xf]
    %v57 = vld [vmem:[%s0 + $0x4] sm:$0xf]
    %v58 = vld [vmem:[#allocation3] sm:$0xff]
    %v59 = vld [vmem:[#allocation3 + $0x8] sm:$0xff]
    %v60 = vld [vmem:[#allocation3 + $0x10] sm:$0xff]
    %v61 = vld [vmem:[#allocation3 + $0x18] sm:$0xff]
    %v62 = vld [vmem:[#allocation3 + $0x20] sm:$0xff]
    %v63 = vld [vmem:[#allocation3 + $0x28] sm:$0xff]
    %v64 = vld [vmem:[#allocation3 + $0x30] sm:$0xff]
    %v65 = vld [vmem:[#allocation3 + $0x38] sm:$0xff]
    %v66 = vld [vmem:[#allocation3 + $0x40] sm:$0xff]
    %v67 = vld [vmem:[#allocation3 + $0x48] sm:$0xff]
    %v68 = vld [vmem:[#allocation3 + $0x50] sm:$0xff]
    %v69 = vld [vmem:[#allocation3 + $0x58] sm:$0xff]
    %v70 = vld [vmem:[#allocation3 + $0x60] sm:$0xff]
    %v71 = vld [vmem:[#allocation3 + $0x68] sm:$0xff]
    %v72 = vld [vmem:[#allocation3 + $0x70] sm:$0xff]
    %v73 = vld [vmem:[#allocation3 + $0x78] sm:$0xff]
    %v74 = vld [vmem:[%s2] sm:$0x3]
    %v76 = vlaneseq
    %v77 = vshrl.u32 %v76, 7
    %v78 = vsub.s32 0, %v77
    %v79 = vrot.slane %v74, %v78
    %v80 = vlaneseq
    %v81 = vshrl.u32 %v80, 7
    %v82 = vsub.s32 1, %v81
    %v83 = vrot.slane %v74, %v82
    %v88 = vunpack.c.l.b16 %v56
    %v89 = vunpack.c.l.b16 %v57
    %v90 = vpack.c.b16 %v89, %v88
    %v108 = vunpack.c.l.b16 %v58
    %v109 = vunpack.c.h.b16 %v58
    %v110 = vunpack.c.l.b16 %v59
    %v111 = vunpack.c.h.b16 %v59
    %v112 = vunpack.c.l.b16 %v60
    %v113 = vunpack.c.h.b16 %v60
    %v114 = vunpack.c.l.b16 %v61
    %v115 = vunpack.c.h.b16 %v61
    %v116 = vunpack.c.l.b16 %v62
    %v117 = vunpack.c.h.b16 %v62
    %v118 = vunpack.c.l.b16 %v63
    %v119 = vunpack.c.h.b16 %v63
    %v120 = vunpack.c.l.b16 %v64
    %v121 = vunpack.c.h.b16 %v64
    %v122 = vunpack.c.l.b16 %v65
    %v123 = vunpack.c.h.b16 %v65
    %v124 = vunpack.c.l.b16 %v66
    %v125 = vunpack.c.h.b16 %v66
    %v126 = vunpack.c.l.b16 %v67
    %v127 = vunpack.c.h.b16 %v67
    %v128 = vunpack.c.l.b16 %v68
    %v129 = vunpack.c.h.b16 %v68
    %v130 = vunpack.c.l.b16 %v69
    %v131 = vunpack.c.h.b16 %v69
    %v132 = vunpack.c.l.b16 %v70
    %v133 = vunpack.c.h.b16 %v70
    %v134 = vunpack.c.l.b16 %v71
    %v135 = vunpack.c.h.b16 %v71
    %v136 = vunpack.c.l.b16 %v72
    %v137 = vunpack.c.h.b16 %v72
    %v138 = vunpack.c.l.b16 %v73
    %v139 = vunpack.c.h.b16 %v73
    %v140 = vpack.c.b16 %v110, %v108
    %v141 = vpack.c.b16 %v111, %v109
    %v142 = vpack.c.b16 %v114, %v112
    %v143 = vpack.c.b16 %v115, %v113
    %v144 = vpack.c.b16 %v118, %v116
    %v145 = vpack.c.b16 %v119, %v117
    %v146 = vpack.c.b16 %v122, %v120
    %v147 = vpack.c.b16 %v123, %v121
    %v148 = vpack.c.b16 %v126, %v124
    %v149 = vpack.c.b16 %v127, %v125
    %v150 = vpack.c.b16 %v130, %v128
    %v151 = vpack.c.b16 %v131, %v129
    %v152 = vpack.c.b16 %v134, %v132
    %v153 = vpack.c.b16 %v135, %v133
    %v154 = vpack.c.b16 %v138, %v136
    %v155 = vpack.c.b16 %v139, %v137
    %172 = vmatprep.subr.bf16.mxu0 %v141
    %173 = vmatpush1.bf16.msra.mxu0 %v140
    %174 = vmatprep.subr.bf16.mxu0 %v143
    %175 = vmatpush1.bf16.msra.mxu0 %v142
    %176 = vmatprep.subr.bf16.mxu0 %v145
    %177 = vmatpush1.bf16.msra.mxu0 %v144
    %178 = vmatprep.subr.bf16.mxu0 %v147
    %179 = vmatpush1.bf16.msra.mxu0 %v146
    %180 = vmatprep.subr.bf16.mxu0 %v149
    %181 = vmatpush1.bf16.msra.mxu0 %v148
    %182 = vmatprep.subr.bf16.mxu0 %v151
    %183 = vmatpush1.bf16.msra.mxu0 %v150
    %184 = vmatprep.subr.bf16.mxu0 %v153
    %185 = vmatpush1.bf16.msra.mxu0 %v152
    %186 = vmatprep.subr.bf16.mxu0 %v155
    %187 = vmatpush1.bf16.msra.mxu0 %v154
    %188 = vmatprep.subr.bf16.mxu0 0
    %189 = vmatpush1.bf16.msra.mxu0 0
    %190 = vmatprep.subr.bf16.mxu0 0
    %191 = vmatpush1.bf16.msra.mxu0 0
    %192 = vmatprep.subr.bf16.mxu0 0
    %193 = vmatpush1.bf16.msra.mxu0 0
    %194 = vmatprep.subr.bf16.mxu0 0
    %195 = vmatpush1.bf16.msra.mxu0 0
    %196 = vmatprep.subr.bf16.mxu0 0
    %197 = vmatpush1.bf16.msra.mxu0 0
    %198 = vmatprep.subr.bf16.mxu0 0
    %199 = vmatpush1.bf16.msra.mxu0 0
    %200 = vmatprep.subr.bf16.mxu0 0
    %201 = vmatpush1.bf16.msra.mxu0 0
    %202 = vmatprep.subr.bf16.mxu0 0
    %203 = vmatpush1.bf16.msra.mxu0 0
    %204 = vmatprep.mubr.bf16.mxu0 0
    %205 = vmatmul.mubr.bf16.gmra.mrb[0].mxu0 %v90
    %v206 = vpop.f32.mrb[0].mxu0
    %v207 = vadd.f32 %v79, %v206
    %v208 = vpop.f32.mrb[0].mxu0
    %v209 = vadd.f32 %v83, %v208
    %v210 = vpop.f32.mrb[0].mxu0
    %v211 = vadd.f32 %v79, %v210
    %v212 = vpop.f32.mrb[0].mxu0
    %v213 = vadd.f32 %v83, %v212
    %214 = vdwg.mxu0
    %v215 = vmax.f32 %v207, 0.0
    %v216 = vmax.f32 %v209, 0.0
    %v217 = vmax.f32 %v211, 0.0
    %v218 = vmax.f32 %v213, 0.0
    %v219 = vpack.c.bf16 %v217, %v215
    %v220 = vpack.c.bf16 %v218, %v216
    %v221 = vld [vmem:[#allocation5] sm:$0xf]
    %v222 = vld [vmem:[#allocation5 + $0x4] sm:$0xf]
    %v223 = vld [vmem:[#allocation5 + $0x8] sm:$0xf]
    %v224 = vld [vmem:[#allocation5 + $0xc] sm:$0xf]
    %v225 = vld [vmem:[#allocation5 + $0x10] sm:$0xf]
    %v226 = vld [vmem:[#allocation5 + $0x14] sm:$0xf]
    %v227 = vld [vmem:[#allocation5 + $0x18] sm:$0xf]
    %v228 = vld [vmem:[#allocation5 + $0x1c] sm:$0xf]
    %v229 = vld [vmem:[#allocation5 + $0x20] sm:$0xf]
    %v230 = vld [vmem:[#allocation5 + $0x24] sm:$0xf]
    %v231 = vld [vmem:[#allocation5 + $0x28] sm:$0xf]
    %v232 = vld [vmem:[#allocation5 + $0x2c] sm:$0xf]
    %v233 = vld [vmem:[#allocation5 + $0x30] sm:$0xf]
    %v234 = vld [vmem:[#allocation5 + $0x34] sm:$0xf]
    %v235 = vld [vmem:[#allocation5 + $0x38] sm:$0xf]
    %v236 = vld [vmem:[#allocation5 + $0x3c] sm:$0xf]
    %v237 = vld [vmem:[#allocation5 + $0x40] sm:$0xf]
    %v238 = vld [vmem:[#allocation5 + $0x44] sm:$0xf]
    %v239 = vld [vmem:[#allocation5 + $0x48] sm:$0xf]
    %v240 = vld [vmem:[#allocation5 + $0x4c] sm:$0xf]
    %v241 = vld [vmem:[#allocation5 + $0x50] sm:$0xf]
    %v242 = vld [vmem:[#allocation5 + $0x54] sm:$0xf]
    %v243 = vld [vmem:[#allocation5 + $0x58] sm:$0xf]
    %v244 = vld [vmem:[#allocation5 + $0x5c] sm:$0xf]
    %v245 = vld [vmem:[#allocation5 + $0x60] sm:$0xf]
    %v246 = vld [vmem:[#allocation5 + $0x64] sm:$0xf]
    %v247 = vld [vmem:[#allocation5 + $0x68] sm:$0xf]
    %v248 = vld [vmem:[#allocation5 + $0x6c] sm:$0xf]
    %v249 = vld [vmem:[#allocation5 + $0x70] sm:$0xf]
    %v250 = vld [vmem:[#allocation5 + $0x74] sm:$0xf]
    %v251 = vld [vmem:[#allocation5 + $0x78] sm:$0xf]
    %v252 = vld [vmem:[#allocation5 + $0x7c] sm:$0xf]
    %v253 = vld [vmem:[%s4] sm:$0x1]
    %v255 = vlaneseq
    %v256 = vshrl.u32 %v255, 7
    %v257 = vsub.s32 0, %v256
    %v258 = vrot.slane %v253, %v257
    %v292 = vunpack.c.l.b16 %v221
    %v293 = vunpack.c.l.b16 %v222
    %v294 = vunpack.c.l.b16 %v223
    %v295 = vunpack.c.l.b16 %v224
    %v296 = vunpack.c.l.b16 %v225
    %v297 = vunpack.c.l.b16 %v226
    %v298 = vunpack.c.l.b16 %v227
    %v299 = vunpack.c.l.b16 %v228
    %v300 = vunpack.c.l.b16 %v229
    %v301 = vunpack.c.l.b16 %v230
    %v302 = vunpack.c.l.b16 %v231
    %v303 = vunpack.c.l.b16 %v232
    %v304 = vunpack.c.l.b16 %v233
    %v305 = vunpack.c.l.b16 %v234
    %v306 = vunpack.c.l.b16 %v235
    %v307 = vunpack.c.l.b16 %v236
    %v308 = vunpack.c.l.b16 %v237
    %v309 = vunpack.c.l.b16 %v238
    %v310 = vunpack.c.l.b16 %v239
    %v311 = vunpack.c.l.b16 %v240
    %v312 = vunpack.c.l.b16 %v241
    %v313 = vunpack.c.l.b16 %v242
    %v314 = vunpack.c.l.b16 %v243
    %v315 = vunpack.c.l.b16 %v244
    %v316 = vunpack.c.l.b16 %v245
    %v317 = vunpack.c.l.b16 %v246
    %v318 = vunpack.c.l.b16 %v247
    %v319 = vunpack.c.l.b16 %v248
    %v320 = vunpack.c.l.b16 %v249
    %v321 = vunpack.c.l.b16 %v250
    %v322 = vunpack.c.l.b16 %v251
    %v323 = vunpack.c.l.b16 %v252
    %v324 = vpack.c.b16 %v293, %v292
    %v325 = vpack.c.b16 %v295, %v294
    %v326 = vpack.c.b16 %v297, %v296
    %v327 = vpack.c.b16 %v299, %v298
    %v328 = vpack.c.b16 %v301, %v300
    %v329 = vpack.c.b16 %v303, %v302
    %v330 = vpack.c.b16 %v305, %v304
    %v331 = vpack.c.b16 %v307, %v306
    %v332 = vpack.c.b16 %v309, %v308
    %v333 = vpack.c.b16 %v311, %v310
    %v334 = vpack.c.b16 %v313, %v312
    %v335 = vpack.c.b16 %v315, %v314
    %v336 = vpack.c.b16 %v317, %v316
    %v337 = vpack.c.b16 %v319, %v318
    %v338 = vpack.c.b16 %v321, %v320
    %v339 = vpack.c.b16 %v323, %v322
    %356 = vmatprep.subr.bf16.mxu0 0
    %357 = vmatpush1.bf16.msra.mxu0 %v324
    %358 = vmatprep.subr.bf16.mxu0 0
    %359 = vmatpush1.bf16.msra.mxu0 %v325
    %360 = vmatprep.subr.bf16.mxu0 0
    %361 = vmatpush1.bf16.msra.mxu0 %v326
    %362 = vmatprep.subr.bf16.mxu0 0
    %363 = vmatpush1.bf16.msra.mxu0 %v327
    %364 = vmatprep.subr.bf16.mxu0 0
    %365 = vmatpush1.bf16.msra.mxu0 %v328
    %366 = vmatprep.subr.bf16.mxu0 0
    %367 = vmatpush1.bf16.msra.mxu0 %v329
    %368 = vmatprep.subr.bf16.mxu0 0
    %369 = vmatpush1.bf16.msra.mxu0 %v330
    %370 = vmatprep.subr.bf16.mxu0 0
    %371 = vmatpush1.bf16.msra.mxu0 %v331
    %372 = vmatprep.subr.bf16.mxu0 0
    %373 = vmatpush1.bf16.msra.mxu0 %v332
    %374 = vmatprep.subr.bf16.mxu0 0
    %375 = vmatpush1.bf16.msra.mxu0 %v333
    %376 = vmatprep.subr.bf16.mxu0 0
    %377 = vmatpush1.bf16.msra.mxu0 %v334
    %378 = vmatprep.subr.bf16.mxu0 0
    %379 = vmatpush1.bf16.msra.mxu0 %v335
    %380 = vmatprep.subr.bf16.mxu0 0
    %381 = vmatpush1.bf16.msra.mxu0 %v336
    %382 = vmatprep.subr.bf16.mxu0 0
    %383 = vmatpush1.bf16.msra.mxu0 %v337
    %384 = vmatprep.subr.bf16.mxu0 0
    %385 = vmatpush1.bf16.msra.mxu0 %v338
    %386 = vmatprep.subr.bf16.mxu0 0
    %387 = vmatpush1.bf16.msra.mxu0 %v339
    %388 = vmatprep.mubr.bf16.mxu0 %v220
    %389 = vmatmul.mubr.bf16.gmra.mrb[0].mxu0 %v219
    %v390 = vpop.f32.mrb[0].mxu0
    %v391 = vadd.f32 %v258, %v390
    %v392 = vpop.f32.mrb[0].mxu0
    %v393 = vpop.f32.mrb[0].mxu0
    %v394 = vadd.f32 %v258, %v393
    %v395 = vpop.f32.mrb[0].mxu0
    %396 = vdwg.mxu0
    %v397 = vmax.f32 %v391, 0.0
    %v398 = vmax.f32 %v394, 0.0
    %v399 = vld [vmem:[%s5] sm:$0x1]
    %v401 = vlaneseq
    %v402 = vshrl.u32 %v401, 7
    %v403 = vsub.s32 0, %v402
    %v404 = vrot.slane %v399, %v403
    %v406 = vmul.f32 %v397, %v404
    %v407 = vmul.f32 %v398, %v404
    %408 = vadd.xlane.f32.xlu0 %v406
    %v409 = vpop.xlane.xlu0 %408
    %410 = vadd.xlane.f32.xlu0 %v407
    %v411 = vpop.xlane.xlu0 %410
    %s412 = sld [smem:[#allocation2]]
    %v413 = vstv %s412
    %v414 = vadd.f32 %v409, %v413
    %v415 = vadd.f32 %v411, %v413
    %v416 = vxor.u32 %v414, 2147483648
    %v417 = vxor.u32 %v415, 2147483648
    %v418 = vmul.f32 %v416, 1.442695
    %v419 = vpow.pop %v418
    %v420 = vmul.f32 %v417, 1.442695
    %v421 = vpow.pop %v420
    %v422 = vadd.f32 %v419, 1.0
    %v423 = vadd.f32 %v421, 1.0
    %v424 = vrcp.pop %v422
    %v425 = vmul.f32 1.0, %v424
    %v426 = vrcp.pop %v423
    %v427 = vmul.f32 1.0, %v426
    %vm428 = vcmask 7168
    %429 = vst.msk [vmem:[%s7] sm:$0xff] %vm428, %v425
    %430 = vst.msk [vmem:[%s7 + $0x8] sm:$0xff] %vm428, %v427
    // Predicated region
    $region38: #{multimodal_forward.1} parent=1 // pred_check
      _
    $region39: #{multimodal_forward.1} parent=1 // pred_check_branch
      %432 = sbr.rel (0) target = $region41
    $region40: #{multimodal_forward.1} parent=1 // pred_region
      _
    $region41: #{multimodal_forward.1} parent=1 // pred_fallthru
      _
    // Predicated region
    $region42: #{multimodal_forward.1} parent=1 // pred_check
      _
    $region43: #{multimodal_forward.1} parent=1 // pred_check_branch
      %434 = sbr.rel (0) target = $region45
    $region44: #{multimodal_forward.1} parent=1 // pred_region
      _
    $region45: #{multimodal_forward.1} parent=1 // pred_fallthru
      _
    %435 = vsyncpa [#allocation4], 1
    %436 = vsyncpa [#allocation6], 1

</llo_original>
